<compile_context>
chip_gen: v7x
topology: tpu7x:2x2x1
jax: 0.10.0
libtpu: 0.0.40
codegen_flags: <defaults>
</compile_context>

<pallas_src>
import jax
import jax.numpy as jnp
from jax.experimental import pallas as pl
from jax.experimental.pallas import tpu as pltpu


def _conv1x1_sigmoid_kernel(x_ref, w_ref, b_ref, o_ref):
    # Single-shot kernel: the whole problem lives in VMEM.
    # Cast the tiny activation row(s) to the stored weight dtype so the MXU
    # consumes the weight as-is (bf16 native path when weights are bf16).
    x = x_ref[...].astype(w_ref.dtype)               # (M, C_in)     e.g. bf16
    w = w_ref[...]                                   # (C_in, C_out) stored dtype
    acc = jnp.dot(x, w, preferred_element_type=jnp.float32)   # MXU, f32 accum
    acc = acc + b_ref[...]                           # (1, C_out) f32, broadcasts over rows
    o_ref[...] = jax.nn.sigmoid(acc).astype(o_ref.dtype)      # EUP in f32, cast at store


def prepare_conv1x1_params(weight, bias, weight_dtype=jnp.bfloat16):
    """One-time parameter prep (do NOT run this per forward call).

    weight: (C_out, C_in, 1, 1) PyTorch-layout conv weight
    bias:   (C_out,)
    Returns (w_mat, b_mat) with w_mat: (C_in, C_out) in weight_dtype (default
    bf16 — halves the dominant weight DMA), b_mat: (1, C_out) f32.
    """
    C_out, C_in = weight.shape[0], weight.shape[1]
    w_mat = jnp.asarray(weight.reshape(C_out, C_in).T, dtype=weight_dtype)
    b_mat = jnp.asarray(bias.reshape(1, C_out), dtype=jnp.float32)
    return w_mat, b_mat


def conv1x1_sigmoid(x_nchw, w_mat, b_mat):
    """x_nchw: (N, C_in, H, W); w_mat: (C_in, C_out); b_mat: (1, C_out) f32."""
    N, C_in, H, W = x_nchw.shape
    C_out = w_mat.shape[1]

    # NCHW -> (N*H*W, C_in) rows of pixels. No padding, no slicing; whole-array
    # blocks waive the (8,128) divisibility rule.
    x_mat = jnp.transpose(x_nchw, (0, 2, 3, 1)).reshape(N * H * W, C_in)
    M = x_mat.shape[0]

    out_dtype = x_nchw.dtype
    cost = pl.CostEstimate(
        flops=2 * M * C_in * C_out,
        transcendentals=2 * M * C_out,   # sigmoid = exp + reciprocal
        bytes_accessed=(x_mat.size * x_mat.dtype.itemsize
                        + w_mat.size * w_mat.dtype.itemsize
                        + b_mat.size * b_mat.dtype.itemsize
                        + M * C_out * jnp.dtype(out_dtype).itemsize),
    )

    out_mat = pl.pallas_call(
        _conv1x1_sigmoid_kernel,
        out_shape=jax.ShapeDtypeStruct((M, C_out), out_dtype),
        # No grid: whole-array blocks resident in VMEM. Working set <0.5 MiB,
        # ~1% of even v7x's 64 MiB VMEM, so no tiling / no pipeline overhead.
        in_specs=[
            pl.BlockSpec(memory_space=pltpu.MemorySpace.VMEM),
            pl.BlockSpec(memory_space=pltpu.MemorySpace.VMEM),
            pl.BlockSpec(memory_space=pltpu.MemorySpace.VMEM),
        ],
        out_specs=pl.BlockSpec(memory_space=pltpu.MemorySpace.VMEM),
        cost_estimate=cost,
    )(x_mat, w_mat, b_mat)

    # (N*H*W, C_out) -> NCHW
    out = out_mat.reshape(N, H, W, C_out)
    return jnp.transpose(out, (0, 3, 1, 2))


if __name__ == "__main__":
    key = jax.random.PRNGKey(0)
    k_x, k_w, k_b = jax.random.split(key, 3)

    N, C_in, H, W = 1, 64, 1, 1
    C_out = 1536

    x = jax.random.normal(k_x, (N, C_in, H, W), dtype=jnp.float32)
    # Deterministic synthetic parameters (Conv2d-like scale: 1/sqrt(fan_in))
    fan_in = C_in * 1 * 1
    bound = 1.0 / (fan_in ** 0.5)
    weight = jax.random.uniform(k_w, (C_out, C_in, 1, 1),
                                minval=-bound, maxval=bound, dtype=jnp.float32)
    bias = jax.random.uniform(k_b, (C_out,),
                              minval=-bound, maxval=bound, dtype=jnp.float32)

    # Plain-JAX reference (f32 semantics of the PyTorch module)
    ref = jax.nn.sigmoid(
        jnp.einsum('nchw,oc->nohw', x, weight.reshape(C_out, C_in))
        + bias.reshape(1, C_out, 1, 1)
    )

    fwd = jax.jit(conv1x1_sigmoid)

    # --- default path: bf16-stored weights, x cast down in-kernel, f32 accum ---
    # NOTE: products lose x's low mantissa bits vs pure-f32 math; well within
    # the stated tolerance for this gate/sigmoid module.
    w_bf16, b_mat = prepare_conv1x1_params(weight, bias)           # bf16 default
    out_bf16 = jax.block_until_ready(fwd(x, w_bf16, b_mat))
    assert out_bf16.shape == (N, C_out, H, W)
    assert out_bf16.dtype == x.dtype
    assert jnp.allclose(out_bf16, ref, atol=2e-2, rtol=2e-2)

    # --- opt-in f32 weights: bit-faithful module semantics ---
    w_f32, b_mat_f32 = prepare_conv1x1_params(weight, bias, weight_dtype=jnp.float32)
    out_f32 = jax.block_until_ready(fwd(x, w_f32, b_mat_f32))
    assert out_f32.shape == (N, C_out, H, W)
    assert jnp.allclose(out_f32, ref, atol=1e-5, rtol=1e-5)

    print("KERNEL_OK")
</pallas_src>

<mosaic_0001>
module attributes {stable_mosaic.version = 11 : i64} {
  func.func @_conv1x1_sigmoid_kernel(%arg0: memref<1x64xf32, #tpu.memory_space<vmem>>, %arg1: memref<64x1536xbf16, #tpu.memory_space<vmem>>, %arg2: memref<1x1536xf32, #tpu.memory_space<vmem>>, %arg3: memref<1x1536xf32, #tpu.memory_space<vmem>>) attributes {dimension_semantics = [], scalar_prefetch = 0 : i64, scratch_operands = 0 : i64, tpu.core_type = #tpu.core_type<tc>} {
    %c0 = arith.constant 0 : index
    %c0_0 = arith.constant 0 : index
    %0 = vector.load %arg0[%c0, %c0_0] : memref<1x64xf32, #tpu.memory_space<vmem>>, vector<1x64xf32>
    %1 = arith.truncf %0 : vector<1x64xf32> to vector<1x64xbf16>
    %c0_1 = arith.constant 0 : index
    %c0_2 = arith.constant 0 : index
    %2 = vector.load %arg1[%c0_1, %c0_2] : memref<64x1536xbf16, #tpu.memory_space<vmem>>, vector<64x1536xbf16>
    %cst = arith.constant dense<0.000000e+00> : vector<1x1536xf32>
    %3 = tpu.matmul %1, %2, %cst {dimension_numbers = #tpu.dot_dimension_numbers<[1], [0], [0], [1], [0, 0, 1, 1], [], []>} : vector<1x64xbf16>, vector<64x1536xbf16>, vector<1x1536xf32> -> vector<1x1536xf32>
    %c0_3 = arith.constant 0 : index
    %c0_4 = arith.constant 0 : index
    %4 = vector.load %arg2[%c0_3, %c0_4] : memref<1x1536xf32, #tpu.memory_space<vmem>>, vector<1x1536xf32>
    %5 = arith.addf %3, %4 : vector<1x1536xf32>
    %6 = arith.negf %5 : vector<1x1536xf32>
    %7 = math.exp %6 : vector<1x1536xf32>
    %cst_5 = arith.constant 1.000000e+00 : f32
    %8 = vector.broadcast %cst_5 : f32 to vector<1x1536xf32>
    %9 = arith.addf %8, %7 : vector<1x1536xf32>
    %10 = arith.divf %8, %9 : vector<1x1536xf32>
    %c0_6 = arith.constant 0 : index
    %c0_7 = arith.constant 0 : index
    %11 = vector.load %arg3[%c0_6, %c0_7] : memref<1x1536xf32, #tpu.memory_space<vmem>>, vector<1x1536xf32>
    tpu.vector_store %arg3[%c0_6, %c0_7], %10 {strides = array<i32>} : memref<1x1536xf32, #tpu.memory_space<vmem>>, vector<1x1536xf32>,
    return
  }
}

</mosaic_0001>

<llo_original>
// kernel: conv1x1_sigmoid.1
$region0: #{conv1x1_sigmoid.1}
  #allocation0 [shape = 'u32[]', space=smem, size = 0x4, offset = 0x4, fixed_abs, tag = 'smem constant byte address 0x4 - core index']
  #allocation1 [shape = 'u32[144,128]{1,0:T(1,128)}', space=vmem, size = 0x12000, scoped, tag = 'internal scratch']
  %s0 = inlined_call_operand.vmem [shape: f32[1,64], index: 0, kind: input, shape index: {}]
  %s1 = inlined_call_operand.hbm [shape: bf16[64,1536], index: 1, kind: input, shape index: {}]
  %s2 = inlined_call_operand.hbm [shape: f32[1,1536], index: 2, kind: input, shape index: {}]
  %s3 = inlined_call_operand.hbm [shape: f32[1,1536], index: 3, kind: output, shape index: {}]
  %s4 = sld [smem:[#allocation0]]
  $region30: #{conv1x1_sigmoid.1} parent=0
    _
  %s6 = ssub.s32 1, %s4
  %s7 = scalar_select 0, %s6, %s4
  $region1: #{conv1x1_sigmoid.1} parent=0
    #allocation2 [shape = 'u8[196608]{0}', space=vmem, size = 0x30000, scoped, tag = 'input window, operand 1, single buffered']
    #allocation3 [shape = 's32[1]{0}', space=sflag, size = 0x4, scoped, tag = 'scoped memory for conv1x1_sigmoid.1']
    #allocation4 [shape = 's32[1]{0}', space=sflag, size = 0x4, scoped, tag = 'scoped memory for conv1x1_sigmoid.1']
    #allocation5 [shape = 'u8[6144]{0}', space=vmem, size = 0x1800, scoped, tag = 'input window, operand 2, single buffered']
    #allocation6 [shape = 's32[1]{0}', space=sflag, size = 0x4, scoped, tag = 'scoped memory for conv1x1_sigmoid.1']
    #allocation7 [shape = 'u8[6144]{0}', space=vmem, size = 0x1800, scoped, tag = 'output window, operand 0, single buffered']
    %8 = vsyncpa [#allocation3], 0
    %9 = vsyncpa [#allocation6], 0
    %10 = vsyncpa [#allocation4], 0
    // Predicated region
    $region2: #{conv1x1_sigmoid.1} parent=1 // pred_check
      _
    $region3: #{conv1x1_sigmoid.1} parent=1 // pred_check_branch
      %12 = sbr.rel (0) target = $region5
    $region4: #{conv1x1_sigmoid.1} parent=1 // pred_region
      _
    $region5: #{conv1x1_sigmoid.1} parent=1 // pred_fallthru
      _
    // Predicated region
    $region6: #{conv1x1_sigmoid.1} parent=1 // pred_check
      _
    $region7: #{conv1x1_sigmoid.1} parent=1 // pred_check_branch
      %14 = sbr.rel (0) target = $region9
    $region8: #{conv1x1_sigmoid.1} parent=1 // pred_region
      %s16 = ssub.s32 6144, 6144
      %17 = vsyncadd [#allocation3], %s16
      %s18 = sshll.u32 [#allocation2], 4
      %s19 = int_to_ptr.vmem [resolvable:$true] %s18
      %24 = dma.hbm_to_vmem [thread:$0]  %s1, 6144, %s19, [#allocation3], 768, 768, 48
    $region9: #{conv1x1_sigmoid.1} parent=1 // pred_fallthru
      _
    // Predicated region
    $region10: #{conv1x1_sigmoid.1} parent=1 // pred_check
      _
    $region11: #{conv1x1_sigmoid.1} parent=1 // pred_check_branch
      %26 = sbr.rel (0) target = $region13
    $region12: #{conv1x1_sigmoid.1} parent=1 // pred_region
      %s28 = ssub.s32 192, 192
      %29 = vsyncadd [#allocation6], %s28
      %s31 = sshll.u32 [#allocation5], 4
      %s32 = int_to_ptr.vmem [resolvable:$true] %s31
      %34 = dma.hbm_to_vmem [thread:$0]  %s2, 192, %s32, [#allocation6]
    $region13: #{conv1x1_sigmoid.1} parent=1 // pred_fallthru
      _
    // Predicated region
    $region14: #{conv1x1_sigmoid.1} parent=1 // pred_check
      _
    $region15: #{conv1x1_sigmoid.1} parent=1 // pred_check_branch
      %36 = sbr.rel (0) target = $region17
    $region16: #{conv1x1_sigmoid.1} parent=1 // pred_region
      %37 = dma.done [#allocation3], 6144
    $region17: #{conv1x1_sigmoid.1} parent=1 // pred_fallthru
      _
    // Predicated region
    $region18: #{conv1x1_sigmoid.1} parent=1 // pred_check
      _
    $region19: #{conv1x1_sigmoid.1} parent=1 // pred_check_branch
      %39 = sbr.rel (0) target = $region21
    $region20: #{conv1x1_sigmoid.1} parent=1 // pred_region
      %40 = dma.done [#allocation6], 192
    $region21: #{conv1x1_sigmoid.1} parent=1 // pred_fallthru
      _
    %v42 = vld [vmem:[%s0] sm:$0x1]
    %v43 = vpack.c.bf16 %v42, %v42
    %v44 = vld [vmem:[#allocation2] sm:$0xff]
    %v45 = vld [vmem:[#allocation2 + $0x8] sm:$0xff]
    %v46 = vld [vmem:[#allocation2 + $0x10] sm:$0xff]
    %v47 = vld [vmem:[#allocation2 + $0x18] sm:$0xff]
    %v48 = vld [vmem:[#allocation2 + $0x20] sm:$0xff]
    %v49 = vld [vmem:[#allocation2 + $0x28] sm:$0xff]
    %v50 = vld [vmem:[#allocation2 + $0x30] sm:$0xff]
    %v51 = vld [vmem:[#allocation2 + $0x38] sm:$0xff]
    %v52 = vld [vmem:[#allocation2 + $0x40] sm:$0xff]
    %v53 = vld [vmem:[#allocation2 + $0x48] sm:$0xff]
    %v54 = vld [vmem:[#allocation2 + $0x50] sm:$0xff]
    %v55 = vld [vmem:[#allocation2 + $0x58] sm:$0xff]
    %v56 = vld [vmem:[#allocation2 + $0x60] sm:$0xff]
    %v57 = vld [vmem:[#allocation2 + $0x68] sm:$0xff]
    %v58 = vld [vmem:[#allocation2 + $0x70] sm:$0xff]
    %v59 = vld [vmem:[#allocation2 + $0x78] sm:$0xff]
    %v60 = vld [vmem:[#allocation2 + $0x80] sm:$0xff]
    %v61 = vld [vmem:[#allocation2 + $0x88] sm:$0xff]
    %v62 = vld [vmem:[#allocation2 + $0x90] sm:$0xff]
    %v63 = vld [vmem:[#allocation2 + $0x98] sm:$0xff]
    %v64 = vld [vmem:[#allocation2 + $0xa0] sm:$0xff]
    %v65 = vld [vmem:[#allocation2 + $0xa8] sm:$0xff]
    %v66 = vld [vmem:[#allocation2 + $0xb0] sm:$0xff]
    %v67 = vld [vmem:[#allocation2 + $0xb8] sm:$0xff]
    %v68 = vld [vmem:[#allocation2 + $0xc0] sm:$0xff]
    %v69 = vld [vmem:[#allocation2 + $0xc8] sm:$0xff]
    %v70 = vld [vmem:[#allocation2 + $0xd0] sm:$0xff]
    %v71 = vld [vmem:[#allocation2 + $0xd8] sm:$0xff]
    %v72 = vld [vmem:[#allocation2 + $0xe0] sm:$0xff]
    %v73 = vld [vmem:[#allocation2 + $0xe8] sm:$0xff]
    %v74 = vld [vmem:[#allocation2 + $0xf0] sm:$0xff]
    %v75 = vld [vmem:[#allocation2 + $0xf8] sm:$0xff]
    %v76 = vld [vmem:[#allocation2 + $0x100] sm:$0xff]
    %v77 = vld [vmem:[#allocation2 + $0x108] sm:$0xff]
    %v78 = vld [vmem:[#allocation2 + $0x110] sm:$0xff]
    %v79 = vld [vmem:[#allocation2 + $0x118] sm:$0xff]
    %v80 = vld [vmem:[#allocation2 + $0x120] sm:$0xff]
    %v81 = vld [vmem:[#allocation2 + $0x128] sm:$0xff]
    %v82 = vld [vmem:[#allocation2 + $0x130] sm:$0xff]
    %v83 = vld [vmem:[#allocation2 + $0x138] sm:$0xff]
    %v84 = vld [vmem:[#allocation2 + $0x140] sm:$0xff]
    %v85 = vld [vmem:[#allocation2 + $0x148] sm:$0xff]
    %v86 = vld [vmem:[#allocation2 + $0x150] sm:$0xff]
    %v87 = vld [vmem:[#allocation2 + $0x158] sm:$0xff]
    %v88 = vld [vmem:[#allocation2 + $0x160] sm:$0xff]
    %v89 = vld [vmem:[#allocation2 + $0x168] sm:$0xff]
    %v90 = vld [vmem:[#allocation2 + $0x170] sm:$0xff]
    %v91 = vld [vmem:[#allocation2 + $0x178] sm:$0xff]
    %v92 = vld [vmem:[#allocation5] sm:$0xff]
    %v93 = vld [vmem:[#allocation5 + $0x8] sm:$0xf]
    %v142 = vunpack.c.l.b16 %v44
    %v143 = vunpack.c.h.b16 %v44
    %v144 = vunpack.c.l.b16 %v45
    %v145 = vunpack.c.h.b16 %v45
    %v146 = vunpack.c.l.b16 %v46
    %v147 = vunpack.c.h.b16 %v46
    %v148 = vunpack.c.l.b16 %v47
    %v149 = vunpack.c.h.b16 %v47
    %v150 = vunpack.c.l.b16 %v48
    %v151 = vunpack.c.h.b16 %v48
    %v152 = vunpack.c.l.b16 %v49
    %v153 = vunpack.c.h.b16 %v49
    %v154 = vunpack.c.l.b16 %v50
    %v155 = vunpack.c.h.b16 %v50
    %v156 = vunpack.c.l.b16 %v51
    %v157 = vunpack.c.h.b16 %v51
    %v158 = vunpack.c.l.b16 %v52
    %v159 = vunpack.c.h.b16 %v52
    %v160 = vunpack.c.l.b16 %v53
    %v161 = vunpack.c.h.b16 %v53
    %v162 = vunpack.c.l.b16 %v54
    %v163 = vunpack.c.h.b16 %v54
    %v164 = vunpack.c.l.b16 %v55
    %v165 = vunpack.c.h.b16 %v55
    %v166 = vunpack.c.l.b16 %v56
    %v167 = vunpack.c.h.b16 %v56
    %v168 = vunpack.c.l.b16 %v57
    %v169 = vunpack.c.h.b16 %v57
    %v170 = vunpack.c.l.b16 %v58
    %v171 = vunpack.c.h.b16 %v58
    %v172 = vunpack.c.l.b16 %v59
    %v173 = vunpack.c.h.b16 %v59
    %v174 = vunpack.c.l.b16 %v60
    %v175 = vunpack.c.h.b16 %v60
    %v176 = vunpack.c.l.b16 %v61
    %v177 = vunpack.c.h.b16 %v61
    %v178 = vunpack.c.l.b16 %v62
    %v179 = vunpack.c.h.b16 %v62
    %v180 = vunpack.c.l.b16 %v63
    %v181 = vunpack.c.h.b16 %v63
    %v182 = vunpack.c.l.b16 %v64
    %v183 = vunpack.c.h.b16 %v64
    %v184 = vunpack.c.l.b16 %v65
    %v185 = vunpack.c.h.b16 %v65
    %v186 = vunpack.c.l.b16 %v66
    %v187 = vunpack.c.h.b16 %v66
    %v188 = vunpack.c.l.b16 %v67
    %v189 = vunpack.c.h.b16 %v67
    %v190 = vunpack.c.l.b16 %v68
    %v191 = vunpack.c.h.b16 %v68
    %v192 = vunpack.c.l.b16 %v69
    %v193 = vunpack.c.h.b16 %v69
    %v194 = vunpack.c.l.b16 %v70
    %v195 = vunpack.c.h.b16 %v70
    %v196 = vunpack.c.l.b16 %v71
    %v197 = vunpack.c.h.b16 %v71
    %v198 = vunpack.c.l.b16 %v72
    %v199 = vunpack.c.h.b16 %v72
    %v200 = vunpack.c.l.b16 %v73
    %v201 = vunpack.c.h.b16 %v73
    %v202 = vunpack.c.l.b16 %v74
    %v203 = vunpack.c.h.b16 %v74
    %v204 = vunpack.c.l.b16 %v75
    %v205 = vunpack.c.h.b16 %v75
    %v206 = vunpack.c.l.b16 %v76
    %v207 = vunpack.c.h.b16 %v76
    %v208 = vunpack.c.l.b16 %v77
    %v209 = vunpack.c.h.b16 %v77
    %v210 = vunpack.c.l.b16 %v78
    %v211 = vunpack.c.h.b16 %v78
    %v212 = vunpack.c.l.b16 %v79
    %v213 = vunpack.c.h.b16 %v79
    %v214 = vunpack.c.l.b16 %v80
    %v215 = vunpack.c.h.b16 %v80
    %v216 = vunpack.c.l.b16 %v81
    %v217 = vunpack.c.h.b16 %v81
    %v218 = vunpack.c.l.b16 %v82
    %v219 = vunpack.c.h.b16 %v82
    %v220 = vunpack.c.l.b16 %v83
    %v221 = vunpack.c.h.b16 %v83
    %v222 = vunpack.c.l.b16 %v84
    %v223 = vunpack.c.h.b16 %v84
    %v224 = vunpack.c.l.b16 %v85
    %v225 = vunpack.c.h.b16 %v85
    %v226 = vunpack.c.l.b16 %v86
    %v227 = vunpack.c.h.b16 %v86
    %v228 = vunpack.c.l.b16 %v87
    %v229 = vunpack.c.h.b16 %v87
    %v230 = vunpack.c.l.b16 %v88
    %v231 = vunpack.c.h.b16 %v88
    %v232 = vunpack.c.l.b16 %v89
    %v233 = vunpack.c.h.b16 %v89
    %v234 = vunpack.c.l.b16 %v90
    %v235 = vunpack.c.h.b16 %v90
    %v236 = vunpack.c.l.b16 %v91
    %v237 = vunpack.c.h.b16 %v91
    %v238 = vpack.c.b16 %v154, %v142
    %v239 = vpack.c.b16 %v155, %v143
    %v240 = vpack.c.b16 %v156, %v144
    %v241 = vpack.c.b16 %v157, %v145
    %v242 = vpack.c.b16 %v158, %v146
    %v243 = vpack.c.b16 %v159, %v147
    %v244 = vpack.c.b16 %v160, %v148
    %v245 = vpack.c.b16 %v161, %v149
    %v246 = vpack.c.b16 %v162, %v150
    %v247 = vpack.c.b16 %v163, %v151
    %v248 = vpack.c.b16 %v164, %v152
    %v249 = vpack.c.b16 %v165, %v153
    %v250 = vpack.c.b16 %v178, %v166
    %v251 = vpack.c.b16 %v179, %v167
    %v252 = vpack.c.b16 %v180, %v168
    %v253 = vpack.c.b16 %v181, %v169
    %v254 = vpack.c.b16 %v182, %v170
    %v255 = vpack.c.b16 %v183, %v171
    %v256 = vpack.c.b16 %v184, %v172
    %v257 = vpack.c.b16 %v185, %v173
    %v258 = vpack.c.b16 %v186, %v174
    %v259 = vpack.c.b16 %v187, %v175
    %v260 = vpack.c.b16 %v188, %v176
    %v261 = vpack.c.b16 %v189, %v177
    %v262 = vpack.c.b16 %v202, %v190
    %v263 = vpack.c.b16 %v203, %v191
    %v264 = vpack.c.b16 %v204, %v192
    %v265 = vpack.c.b16 %v205, %v193
    %v266 = vpack.c.b16 %v206, %v194
    %v267 = vpack.c.b16 %v207, %v195
    %v268 = vpack.c.b16 %v208, %v196
    %v269 = vpack.c.b16 %v209, %v197
    %v270 = vpack.c.b16 %v210, %v198
    %v271 = vpack.c.b16 %v211, %v199
    %v272 = vpack.c.b16 %v212, %v200
    %v273 = vpack.c.b16 %v213, %v201
    %v274 = vpack.c.b16 %v226, %v214
    %v275 = vpack.c.b16 %v227, %v215
    %v276 = vpack.c.b16 %v228, %v216
    %v277 = vpack.c.b16 %v229, %v217
    %v278 = vpack.c.b16 %v230, %v218
    %v279 = vpack.c.b16 %v231, %v219
    %v280 = vpack.c.b16 %v232, %v220
    %v281 = vpack.c.b16 %v233, %v221
    %v282 = vpack.c.b16 %v234, %v222
    %v283 = vpack.c.b16 %v235, %v223
    %v284 = vpack.c.b16 %v236, %v224
    %v285 = vpack.c.b16 %v237, %v225
    %v336 = vlaneseq
    %v337 = vshrl.u32 %v336, 7
    %v338 = vsub.s32 0, %v337
    %v339 = vrot.slane %v92, %v338
    %v340 = vlaneseq
    %v341 = vshrl.u32 %v340, 7
    %v342 = vsub.s32 1, %v341
    %v343 = vrot.slane %v92, %v342
    %v344 = vlaneseq
    %v345 = vshrl.u32 %v344, 7
    %v346 = vsub.s32 2, %v345
    %v347 = vrot.slane %v92, %v346
    %v348 = vlaneseq
    %v349 = vshrl.u32 %v348, 7
    %v350 = vsub.s32 3, %v349
    %v351 = vrot.slane %v92, %v350
    %v352 = vlaneseq
    %v353 = vshrl.u32 %v352, 7
    %v354 = vsub.s32 4, %v353
    %v355 = vrot.slane %v92, %v354
    %v356 = vlaneseq
    %v357 = vshrl.u32 %v356, 7
    %v358 = vsub.s32 5, %v357
    %v359 = vrot.slane %v92, %v358
    %v360 = vlaneseq
    %v361 = vshrl.u32 %v360, 7
    %v362 = vsub.s32 6, %v361
    %v363 = vrot.slane %v92, %v362
    %v364 = vlaneseq
    %v365 = vshrl.u32 %v364, 7
    %v366 = vsub.s32 7, %v365
    %v367 = vrot.slane %v92, %v366
    %v368 = vlaneseq
    %v369 = vshrl.u32 %v368, 7
    %v370 = vsub.s32 0, %v369
    %v371 = vrot.slane %v93, %v370
    %v372 = vlaneseq
    %v373 = vshrl.u32 %v372, 7
    %v374 = vsub.s32 1, %v373
    %v375 = vrot.slane %v93, %v374
    %v376 = vlaneseq
    %v377 = vshrl.u32 %v376, 7
    %v378 = vsub.s32 2, %v377
    %v379 = vrot.slane %v93, %v378
    %v380 = vlaneseq
    %v381 = vshrl.u32 %v380, 7
    %v382 = vsub.s32 3, %v381
    %v383 = vrot.slane %v93, %v382
    %vm396 = vcmask 523264
    %v398 = vsel %vm396, %v43, 0
    %400 = vmatprep.subr.bf16.mxu0 %v239
    %401 = vmatpush1.bf16.msra.mxu0 %v238
    %402 = vmatprep.subr.bf16.mxu0 %v251
    %403 = vmatpush1.bf16.msra.mxu0 %v250
    %404 = vmatprep.subr.bf16.mxu0 %v263
    %405 = vmatpush1.bf16.msra.mxu0 %v262
    %406 = vmatprep.subr.bf16.mxu0 %v275
    %407 = vmatpush1.bf16.msra.mxu0 %v274
    %408 = vmatprep.subr.bf16.mxu0 0
    %409 = vmatpush1.bf16.msra.mxu0 0
    %410 = vmatprep.subr.bf16.mxu0 0
    %411 = vmatpush1.bf16.msra.mxu0 0
    %412 = vmatprep.subr.bf16.mxu0 0
    %413 = vmatpush1.bf16.msra.mxu0 0
    %414 = vmatprep.subr.bf16.mxu0 0
    %415 = vmatpush1.bf16.msra.mxu0 0
    %416 = vmatprep.subr.bf16.mxu0 0
    %417 = vmatpush1.bf16.msra.mxu0 0
    %418 = vmatprep.subr.bf16.mxu0 0
    %419 = vmatpush1.bf16.msra.mxu0 0
    %420 = vmatprep.subr.bf16.mxu0 0
    %421 = vmatpush1.bf16.msra.mxu0 0
    %422 = vmatprep.subr.bf16.mxu0 0
    %423 = vmatpush1.bf16.msra.mxu0 0
    %424 = vmatprep.subr.bf16.mxu0 0
    %425 = vmatpush1.bf16.msra.mxu0 0
    %426 = vmatprep.subr.bf16.mxu0 0
    %427 = vmatpush1.bf16.msra.mxu0 0
    %428 = vmatprep.subr.bf16.mxu0 0
    %429 = vmatpush1.bf16.msra.mxu0 0
    %430 = vmatprep.subr.bf16.mxu0 0
    %431 = vmatpush1.bf16.msra.mxu0 0
    %432 = vmatprep.mubr.bf16.mxu0 0
    %433 = vmatmul.mubr.bf16.gmra.mrb[0].mxu0 %v398
    %v434 = vpop.f32.mrb[0].mxu0
    %v435 = vadd.f32 %v339, %v434
    %v436 = vpop.f32.mrb[0].mxu0
    %v437 = vadd.f32 %v343, %v436
    %v438 = vpop.f32.mrb[0].mxu0
    %v439 = vpop.f32.mrb[0].mxu0
    %440 = vdwg.mxu0
    %441 = vmatprep.subr.bf16.mxu0 %v241
    %442 = vmatpush1.bf16.msra.mxu0 %v240
    %443 = vmatprep.subr.bf16.mxu0 %v253
    %444 = vmatpush1.bf16.msra.mxu0 %v252
    %445 = vmatprep.subr.bf16.mxu0 %v265
    %446 = vmatpush1.bf16.msra.mxu0 %v264
    %447 = vmatprep.subr.bf16.mxu0 %v277
    %448 = vmatpush1.bf16.msra.mxu0 %v276
    %449 = vmatprep.subr.bf16.mxu0 0
    %450 = vmatpush1.bf16.msra.mxu0 0
    %451 = vmatprep.subr.bf16.mxu0 0
    %452 = vmatpush1.bf16.msra.mxu0 0
    %453 = vmatprep.subr.bf16.mxu0 0
    %454 = vmatpush1.bf16.msra.mxu0 0
    %455 = vmatprep.subr.bf16.mxu0 0
    %456 = vmatpush1.bf16.msra.mxu0 0
    %457 = vmatprep.subr.bf16.mxu0 0
    %458 = vmatpush1.bf16.msra.mxu0 0
    %459 = vmatprep.subr.bf16.mxu0 0
    %460 = vmatpush1.bf16.msra.mxu0 0
    %461 = vmatprep.subr.bf16.mxu0 0
    %462 = vmatpush1.bf16.msra.mxu0 0
    %463 = vmatprep.subr.bf16.mxu0 0
    %464 = vmatpush1.bf16.msra.mxu0 0
    %465 = vmatprep.subr.bf16.mxu0 0
    %466 = vmatpush1.bf16.msra.mxu0 0
    %467 = vmatprep.subr.bf16.mxu0 0
    %468 = vmatpush1.bf16.msra.mxu0 0
    %469 = vmatprep.subr.bf16.mxu0 0
    %470 = vmatpush1.bf16.msra.mxu0 0
    %471 = vmatprep.subr.bf16.mxu0 0
    %472 = vmatpush1.bf16.msra.mxu0 0
    %473 = vmatprep.mubr.bf16.mxu0 0
    %474 = vmatmul.mubr.bf16.gmra.mrb[0].mxu0 %v398
    %v475 = vpop.f32.mrb[0].mxu0
    %v476 = vadd.f32 %v347, %v475
    %v477 = vpop.f32.mrb[0].mxu0
    %v478 = vadd.f32 %v351, %v477
    %v479 = vpop.f32.mrb[0].mxu0
    %v480 = vpop.f32.mrb[0].mxu0
    %481 = vdwg.mxu0
    %482 = vmatprep.subr.bf16.mxu0 %v243
    %483 = vmatpush1.bf16.msra.mxu0 %v242
    %484 = vmatprep.subr.bf16.mxu0 %v255
    %485 = vmatpush1.bf16.msra.mxu0 %v254
    %486 = vmatprep.subr.bf16.mxu0 %v267
    %487 = vmatpush1.bf16.msra.mxu0 %v266
    %488 = vmatprep.subr.bf16.mxu0 %v279
    %489 = vmatpush1.bf16.msra.mxu0 %v278
    %490 = vmatprep.subr.bf16.mxu0 0
    %491 = vmatpush1.bf16.msra.mxu0 0
    %492 = vmatprep.subr.bf16.mxu0 0
    %493 = vmatpush1.bf16.msra.mxu0 0
    %494 = vmatprep.subr.bf16.mxu0 0
    %495 = vmatpush1.bf16.msra.mxu0 0
    %496 = vmatprep.subr.bf16.mxu0 0
    %497 = vmatpush1.bf16.msra.mxu0 0
    %498 = vmatprep.subr.bf16.mxu0 0
    %499 = vmatpush1.bf16.msra.mxu0 0
    %500 = vmatprep.subr.bf16.mxu0 0
    %501 = vmatpush1.bf16.msra.mxu0 0
    %502 = vmatprep.subr.bf16.mxu0 0
    %503 = vmatpush1.bf16.msra.mxu0 0
    %504 = vmatprep.subr.bf16.mxu0 0
    %505 = vmatpush1.bf16.msra.mxu0 0
    %506 = vmatprep.subr.bf16.mxu0 0
    %507 = vmatpush1.bf16.msra.mxu0 0
    %508 = vmatprep.subr.bf16.mxu0 0
    %509 = vmatpush1.bf16.msra.mxu0 0
    %510 = vmatprep.subr.bf16.mxu0 0
    %511 = vmatpush1.bf16.msra.mxu0 0
    %512 = vmatprep.subr.bf16.mxu0 0
    %513 = vmatpush1.bf16.msra.mxu0 0
    %514 = vmatprep.mubr.bf16.mxu0 0
    %515 = vmatmul.mubr.bf16.gmra.mrb[0].mxu0 %v398
    %v516 = vpop.f32.mrb[0].mxu0
    %v517 = vadd.f32 %v355, %v516
    %v518 = vpop.f32.mrb[0].mxu0
    %v519 = vadd.f32 %v359, %v518
    %v520 = vpop.f32.mrb[0].mxu0
    %v521 = vpop.f32.mrb[0].mxu0
    %522 = vdwg.mxu0
    %523 = vmatprep.subr.bf16.mxu0 %v245
    %524 = vmatpush1.bf16.msra.mxu0 %v244
    %525 = vmatprep.subr.bf16.mxu0 %v257
    %526 = vmatpush1.bf16.msra.mxu0 %v256
    %527 = vmatprep.subr.bf16.mxu0 %v269
    %528 = vmatpush1.bf16.msra.mxu0 %v268
    %529 = vmatprep.subr.bf16.mxu0 %v281
    %530 = vmatpush1.bf16.msra.mxu0 %v280
    %531 = vmatprep.subr.bf16.mxu0 0
    %532 = vmatpush1.bf16.msra.mxu0 0
    %533 = vmatprep.subr.bf16.mxu0 0
    %534 = vmatpush1.bf16.msra.mxu0 0
    %535 = vmatprep.subr.bf16.mxu0 0
    %536 = vmatpush1.bf16.msra.mxu0 0
    %537 = vmatprep.subr.bf16.mxu0 0
    %538 = vmatpush1.bf16.msra.mxu0 0
    %539 = vmatprep.subr.bf16.mxu0 0
    %540 = vmatpush1.bf16.msra.mxu0 0
    %541 = vmatprep.subr.bf16.mxu0 0
    %542 = vmatpush1.bf16.msra.mxu0 0
    %543 = vmatprep.subr.bf16.mxu0 0
    %544 = vmatpush1.bf16.msra.mxu0 0
    %545 = vmatprep.subr.bf16.mxu0 0
    %546 = vmatpush1.bf16.msra.mxu0 0
    %547 = vmatprep.subr.bf16.mxu0 0
    %548 = vmatpush1.bf16.msra.mxu0 0
    %549 = vmatprep.subr.bf16.mxu0 0
    %550 = vmatpush1.bf16.msra.mxu0 0
    %551 = vmatprep.subr.bf16.mxu0 0
    %552 = vmatpush1.bf16.msra.mxu0 0
    %553 = vmatprep.subr.bf16.mxu0 0
    %554 = vmatpush1.bf16.msra.mxu0 0
    %555 = vmatprep.mubr.bf16.mxu0 0
    %556 = vmatmul.mubr.bf16.gmra.mrb[0].mxu0 %v398
    %v557 = vpop.f32.mrb[0].mxu0
    %v558 = vadd.f32 %v363, %v557
    %v559 = vpop.f32.mrb[0].mxu0
    %v560 = vadd.f32 %v367, %v559
    %v561 = vpop.f32.mrb[0].mxu0
    %v562 = vpop.f32.mrb[0].mxu0
    %563 = vdwg.mxu0
    %564 = vmatprep.subr.bf16.mxu0 %v247
    %565 = vmatpush1.bf16.msra.mxu0 %v246
    %566 = vmatprep.subr.bf16.mxu0 %v259
    %567 = vmatpush1.bf16.msra.mxu0 %v258
    %568 = vmatprep.subr.bf16.mxu0 %v271
    %569 = vmatpush1.bf16.msra.mxu0 %v270
    %570 = vmatprep.subr.bf16.mxu0 %v283
    %571 = vmatpush1.bf16.msra.mxu0 %v282
    %572 = vmatprep.subr.bf16.mxu0 0
    %573 = vmatpush1.bf16.msra.mxu0 0
    %574 = vmatprep.subr.bf16.mxu0 0
    %575 = vmatpush1.bf16.msra.mxu0 0
    %576 = vmatprep.subr.bf16.mxu0 0
    %577 = vmatpush1.bf16.msra.mxu0 0
    %578 = vmatprep.subr.bf16.mxu0 0
    %579 = vmatpush1.bf16.msra.mxu0 0
    %580 = vmatprep.subr.bf16.mxu0 0
    %581 = vmatpush1.bf16.msra.mxu0 0
    %582 = vmatprep.subr.bf16.mxu0 0
    %583 = vmatpush1.bf16.msra.mxu0 0
    %584 = vmatprep.subr.bf16.mxu0 0
    %585 = vmatpush1.bf16.msra.mxu0 0
    %586 = vmatprep.subr.bf16.mxu0 0
    %587 = vmatpush1.bf16.msra.mxu0 0
    %588 = vmatprep.subr.bf16.mxu0 0
    %589 = vmatpush1.bf16.msra.mxu0 0
    %590 = vmatprep.subr.bf16.mxu0 0
    %591 = vmatpush1.bf16.msra.mxu0 0
    %592 = vmatprep.subr.bf16.mxu0 0
    %593 = vmatpush1.bf16.msra.mxu0 0
    %594 = vmatprep.subr.bf16.mxu0 0
    %595 = vmatpush1.bf16.msra.mxu0 0
    %596 = vmatprep.mubr.bf16.mxu0 0
    %597 = vmatmul.mubr.bf16.gmra.mrb[0].mxu0 %v398
    %v598 = vpop.f32.mrb[0].mxu0
    %v599 = vadd.f32 %v371, %v598
    %v600 = vpop.f32.mrb[0].mxu0
    %v601 = vadd.f32 %v375, %v600
    %v602 = vpop.f32.mrb[0].mxu0
    %v603 = vpop.f32.mrb[0].mxu0
    %604 = vdwg.mxu0
    %605 = vmatprep.subr.bf16.mxu0 %v249
    %606 = vmatpush1.bf16.msra.mxu0 %v248
    %607 = vmatprep.subr.bf16.mxu0 %v261
    %608 = vmatpush1.bf16.msra.mxu0 %v260
    %609 = vmatprep.subr.bf16.mxu0 %v273
    %610 = vmatpush1.bf16.msra.mxu0 %v272
    %611 = vmatprep.subr.bf16.mxu0 %v285
    %612 = vmatpush1.bf16.msra.mxu0 %v284
    %613 = vmatprep.subr.bf16.mxu0 0
    %614 = vmatpush1.bf16.msra.mxu0 0
    %615 = vmatprep.subr.bf16.mxu0 0
    %616 = vmatpush1.bf16.msra.mxu0 0
    %617 = vmatprep.subr.bf16.mxu0 0
    %618 = vmatpush1.bf16.msra.mxu0 0
    %619 = vmatprep.subr.bf16.mxu0 0
    %620 = vmatpush1.bf16.msra.mxu0 0
    %621 = vmatprep.subr.bf16.mxu0 0
    %622 = vmatpush1.bf16.msra.mxu0 0
    %623 = vmatprep.subr.bf16.mxu0 0
    %624 = vmatpush1.bf16.msra.mxu0 0
    %625 = vmatprep.subr.bf16.mxu0 0
    %626 = vmatpush1.bf16.msra.mxu0 0
    %627 = vmatprep.subr.bf16.mxu0 0
    %628 = vmatpush1.bf16.msra.mxu0 0
    %629 = vmatprep.subr.bf16.mxu0 0
    %630 = vmatpush1.bf16.msra.mxu0 0
    %631 = vmatprep.subr.bf16.mxu0 0
    %632 = vmatpush1.bf16.msra.mxu0 0
    %633 = vmatprep.subr.bf16.mxu0 0
    %634 = vmatpush1.bf16.msra.mxu0 0
    %635 = vmatprep.subr.bf16.mxu0 0
    %636 = vmatpush1.bf16.msra.mxu0 0
    %637 = vmatprep.mubr.bf16.mxu0 0
    %638 = vmatmul.mubr.bf16.gmra.mrb[0].mxu0 %v398
    %v639 = vpop.f32.mrb[0].mxu0
    %v640 = vadd.f32 %v379, %v639
    %v641 = vpop.f32.mrb[0].mxu0
    %v642 = vadd.f32 %v383, %v641
    %v643 = vpop.f32.mrb[0].mxu0
    %v644 = vpop.f32.mrb[0].mxu0
    %645 = vdwg.mxu0
    %v646 = vxor.u32 %v435, 2147483648
    %v647 = vxor.u32 %v437, 2147483648
    %v648 = vxor.u32 %v476, 2147483648
    %v649 = vxor.u32 %v478, 2147483648
    %v650 = vxor.u32 %v517, 2147483648
    %v651 = vxor.u32 %v519, 2147483648
    %v652 = vxor.u32 %v558, 2147483648
    %v653 = vxor.u32 %v560, 2147483648
    %v654 = vxor.u32 %v599, 2147483648
    %v655 = vxor.u32 %v601, 2147483648
    %v656 = vxor.u32 %v640, 2147483648
    %v657 = vxor.u32 %v642, 2147483648
    %v658 = vmul.f32 %v646, 1.442695
    %v659 = vpow.pop %v658
    %v660 = vmul.f32 %v647, 1.442695
    %v661 = vpow.pop %v660
    %v662 = vmul.f32 %v648, 1.442695
    %v663 = vpow.pop %v662
    %v664 = vmul.f32 %v649, 1.442695
    %v665 = vpow.pop %v664
    %v666 = vmul.f32 %v650, 1.442695
    %v667 = vpow.pop %v666
    %v668 = vmul.f32 %v651, 1.442695
    %v669 = vpow.pop %v668
    %v670 = vmul.f32 %v652, 1.442695
    %v671 = vpow.pop %v670
    %v672 = vmul.f32 %v653, 1.442695
    %v673 = vpow.pop %v672
    %v674 = vmul.f32 %v654, 1.442695
    %v675 = vpow.pop %v674
    %v676 = vmul.f32 %v655, 1.442695
    %v677 = vpow.pop %v676
    %v678 = vmul.f32 %v656, 1.442695
    %v679 = vpow.pop %v678
    %v680 = vmul.f32 %v657, 1.442695
    %v681 = vpow.pop %v680
    %v682 = vadd.f32 %v659, 1.0
    %v683 = vadd.f32 %v661, 1.0
    %v684 = vadd.f32 %v663, 1.0
    %v685 = vadd.f32 %v665, 1.0
    %v686 = vadd.f32 %v667, 1.0
    %v687 = vadd.f32 %v669, 1.0
    %v688 = vadd.f32 %v671, 1.0
    %v689 = vadd.f32 %v673, 1.0
    %v690 = vadd.f32 %v675, 1.0
    %v691 = vadd.f32 %v677, 1.0
    %v692 = vadd.f32 %v679, 1.0
    %v693 = vadd.f32 %v681, 1.0
    %v694 = vrcp.pop %v682
    %v695 = vmul.f32 1.0, %v694
    %v696 = vrcp.pop %v683
    %v697 = vmul.f32 1.0, %v696
    %v698 = vrcp.pop %v684
    %v699 = vmul.f32 1.0, %v698
    %v700 = vrcp.pop %v685
    %v701 = vmul.f32 1.0, %v700
    %v702 = vrcp.pop %v686
    %v703 = vmul.f32 1.0, %v702
    %v704 = vrcp.pop %v687
    %v705 = vmul.f32 1.0, %v704
    %v706 = vrcp.pop %v688
    %v707 = vmul.f32 1.0, %v706
    %v708 = vrcp.pop %v689
    %v709 = vmul.f32 1.0, %v708
    %v710 = vrcp.pop %v690
    %v711 = vmul.f32 1.0, %v710
    %v712 = vrcp.pop %v691
    %v713 = vmul.f32 1.0, %v712
    %v714 = vrcp.pop %v692
    %v715 = vmul.f32 1.0, %v714
    %v716 = vrcp.pop %v693
    %v717 = vmul.f32 1.0, %v716
    %v730 = vcombine.low %v695, %v697
    %v731 = vcombine.low %v699, %v701
    %v732 = vcombine.low %v703, %v705
    %v733 = vcombine.low %v707, %v709
    %v735 = vunpack.c.l.s4 1966171168
    %v736 = vunpack.c.0.s8 %v735
    %v737 = vlaneseq
    %v738 = vshrl.u32 %v737, 7
    %v739 = vsub.s32 %v736, %v738
    %v740 = vrot.slane %v730, %v739
    %v742 = vunpack.c.l.s4 1966171168
    %v743 = vunpack.c.0.s8 %v742
    %v744 = vlaneseq
    %v745 = vshrl.u32 %v744, 7
    %v746 = vsub.s32 %v743, %v745
    %v747 = vrot.slane %v731, %v746
    %v749 = vunpack.c.l.s4 1966171168
    %v750 = vunpack.c.0.s8 %v749
    %v751 = vlaneseq
    %v752 = vshrl.u32 %v751, 7
    %v753 = vsub.s32 %v750, %v752
    %v754 = vrot.slane %v732, %v753
    %v756 = vunpack.c.l.s4 1966171168
    %v757 = vunpack.c.0.s8 %v756
    %v758 = vlaneseq
    %v759 = vshrl.u32 %v758, 7
    %v760 = vsub.s32 %v757, %v759
    %v761 = vrot.slane %v733, %v760
    %v762 = vcombine.low %v740, %v747
    %v763 = vcombine.low %v754, %v761
    %v765 = vunpack.c.l.s4 1966171168
    %v766 = vunpack.c.0.s8 %v765
    %v767 = vlaneseq
    %v768 = vshrl.u32 %v767, 7
    %v769 = vsub.s32 %v766, %v768
    %v770 = vrot.slane %v762, %v769
    %v772 = vunpack.c.l.s4 1966171168
    %v773 = vunpack.c.0.s8 %v772
    %v774 = vlaneseq
    %v775 = vshrl.u32 %v774, 7
    %v776 = vsub.s32 %v773, %v775
    %v777 = vrot.slane %v763, %v776
    %v778 = vcombine.low %v770, %v777
    %v779 = vcombine.low %v711, %v713
    %v780 = vcombine.low %v715, %v717
    %v782 = vunpack.c.l.s4 1966171168
    %v783 = vunpack.c.0.s8 %v782
    %v784 = vlaneseq
    %v785 = vshrl.u32 %v784, 7
    %v786 = vsub.s32 %v783, %v785
    %v787 = vrot.slane %v779, %v786
    %v789 = vunpack.c.l.s4 1966171168
    %v790 = vunpack.c.0.s8 %v789
    %v791 = vlaneseq
    %v792 = vshrl.u32 %v791, 7
    %v793 = vsub.s32 %v790, %v792
    %v794 = vrot.slane %v780, %v793
    %v795 = vcombine.low %v787, %v794
    %v797 = vunpack.c.l.s4 1966171168
    %v798 = vunpack.c.0.s8 %v797
    %v799 = vlaneseq
    %v800 = vshrl.u32 %v799, 7
    %v801 = vsub.s32 %v798, %v800
    %v802 = vrot.slane %v795, %v801
    %805 = vst [vmem:[#allocation7] sm:$0xff] %v778
    %v806 = vlaneseq
    %vm807 = vcmp.ge.s32.totalorder %v806, 0
    %vm808 = vcmp.lt.s32.totalorder %v806, 512
    %vm809 = vmand %vm807, %vm808
    %810 = vst.msk [vmem:[#allocation7 + $0x8] sm:$0xf] %vm809, %v802
    // Predicated region
    $region22: #{conv1x1_sigmoid.1} parent=1 // pred_check
      _
    $region23: #{conv1x1_sigmoid.1} parent=1 // pred_check_branch
      %812 = sbr.rel (0) target = $region25
    $region24: #{conv1x1_sigmoid.1} parent=1 // pred_region
      %s814 = ssub.s32 192, 192
      %815 = vsyncadd [#allocation4], %s814
      %s817 = sshll.u32 [#allocation7], 4
      %s818 = int_to_ptr.vmem [resolvable:$true] %s817
      %820 = dma.vmem_to_hbm [thread:$0]  %s818, 192, %s3, [#allocation4]
    $region25: #{conv1x1_sigmoid.1} parent=1 // pred_fallthru
      _
    // Predicated region
    $region26: #{conv1x1_sigmoid.1} parent=1 // pred_check
      _
    $region27: #{conv1x1_sigmoid.1} parent=1 // pred_check_branch
      %822 = sbr.rel (0) target = $region29
    $region28: #{conv1x1_sigmoid.1} parent=1 // pred_region
      %823 = dma.done [#allocation4], 192
    $region29: #{conv1x1_sigmoid.1} parent=1 // pred_fallthru
      _
    %824 = vsyncpa [#allocation3], 1
    %825 = vsyncpa [#allocation6], 1
    %826 = vsyncpa [#allocation4], 1

</llo_original>
